<compile_context>
chip_gen: v5e
topology: v5e:2x2
jax: 0.10.0
libtpu: 0.0.40
codegen_flags: <defaults>
</compile_context>

<pallas_src>
import jax
import jax.numpy as jnp
from jax.experimental import pallas as pl
from jax.experimental.pallas import tpu as pltpu


def _seghead_kernel(x_ref, wt_ref, b_ref, o_ref):
    # x_ref: [TM, D], wt_ref: [D, Cp], b_ref: [1, Cp] (f32), o_ref: [TM, Cp]
    acc = jnp.dot(x_ref[...], wt_ref[...], preferred_element_type=jnp.float32)
    o_ref[...] = (acc + b_ref[...]).astype(o_ref.dtype)


def _round_up(x, m):
    return (x + m - 1) // m * m


def _pick_tm(m_aligned, d, c_pad, itemsize, sublane):
    """Largest row tile (<=1024) whose per-step VMEM footprint stays modest.

    Footprint ~= double-buffered x tile + (double-buffered) resident weight +
    double-buffered out tile; keep it well under the default scoped-VMEM limit
    on all generations (16 MiB v5e / 32 MiB v6e / 32 MiB v7x).
    """
    budget = 12 * 1024 * 1024
    for tm in (1024, 768, 512, 384, 256, 128, 64, 32, 16, 8):
        if tm % sublane != 0 or tm > m_aligned:
            continue
        foot = (2 * tm * d * itemsize          # x (double-buffered)
                + 2 * d * c_pad * itemsize     # weight
                + 2 * tm * c_pad * itemsize)   # out (double-buffered)
        if foot <= budget:
            return tm
    return sublane


@jax.jit
def segmentation_head_forward(x, w, b):
    """x: [..., D], w: [C, D], b: [C] -> {'x': [..., C]}"""
    *lead, d = x.shape
    c = w.shape[0]
    m = 1
    for s in lead:
        m *= s

    dtype = x.dtype
    itemsize = jnp.dtype(dtype).itemsize
    sublane = {4: 8, 2: 16, 1: 32}.get(itemsize, 8)
    lane = 128

    c_pad = _round_up(max(c, lane), lane)           # lane-dense output stores
    m_aligned = _round_up(max(m, sublane), sublane)
    tm = _pick_tm(m_aligned, d, c_pad, itemsize, sublane)
    m_pad = _round_up(m_aligned, tm)

    # Flatten + pad rows (padded rows produce garbage-free `bias` rows that
    # we slice off afterwards).
    x2 = x.reshape(m, d)
    if m_pad != m:
        x2 = jnp.pad(x2, ((0, m_pad - m), (0, 0)))

    # One-time tiny XLA ops: pre-transpose + zero-pad weight, pre-cast bias.
    wt = jnp.pad(w.T, ((0, 0), (0, c_pad - c)))                       # [D, Cp]
    b2 = jnp.pad(b.astype(jnp.float32), (0, c_pad - c)).reshape(1, c_pad)

    grid = (m_pad // tm,)

    cost = pl.CostEstimate(
        flops=2 * m_pad * d * c_pad,
        transcendentals=0,
        bytes_accessed=(m_pad * d * itemsize          # read x
                        + d * c_pad * itemsize        # read W
                        + c_pad * 4                   # read b
                        + m_pad * c_pad * itemsize),  # write out
    )

    out = pl.pallas_call(
        _seghead_kernel,
        out_shape=jax.ShapeDtypeStruct((m_pad, c_pad), dtype),
        grid_spec=pltpu.PrefetchScalarGridSpec(
            num_scalar_prefetch=0,
            grid=grid,
            in_specs=[
                pl.BlockSpec((tm, d), lambda i: (i, 0)),      # x: tiled over M
                pl.BlockSpec((d, c_pad), lambda i: (0, 0)),   # W^T: resident
                pl.BlockSpec((1, c_pad), lambda i: (0, 0)),   # bias: resident
            ],
            out_specs=pl.BlockSpec((tm, c_pad), lambda i: (i, 0)),
        ),
        compiler_params=pltpu.CompilerParams(
            # M tiles are independent -> let Mosaic shard them across the two
            # TensorCores on v7x (harmless no-op on v5e/v6e).
            dimension_semantics=("parallel",),
        ),
        cost_estimate=cost,
    )(x2, wt, b2)

    out = out[:m, :c]
    return {"x": out.reshape(*lead, c)}


def init_params(key, in_features, n_classes, dtype=jnp.float32):
    """Deterministic init matching nn.Linear's default (uniform +-1/sqrt(fan_in))."""
    kw, kb = jax.random.split(key)
    bound = 1.0 / jnp.sqrt(jnp.asarray(in_features, dtype=jnp.float32))
    w = jax.random.uniform(kw, (n_classes, in_features), dtype, -bound, bound)
    b = jax.random.uniform(kb, (n_classes,), dtype, -bound, bound)
    return w, b


if __name__ == "__main__":
    key = jax.random.PRNGKey(0)
    k_x, k_p = jax.random.split(key)

    batch, seq, hidden = 2, 8, 32
    n_classes = 16

    x = jax.random.normal(k_x, (batch, seq, hidden), dtype=jnp.float32)
    w, b = init_params(k_p, hidden, n_classes)

    out = segmentation_head_forward(x, w, b)
    y = jax.block_until_ready(out["x"])

    # sanity check against plain-JAX reference
    ref = x @ w.T + b
    assert y.shape == (batch, seq, n_classes)
    assert jnp.allclose(y, ref, atol=1e-5, rtol=1e-5)

    print("KERNEL_OK")
</pallas_src>

<mosaic_0001>
module attributes {stable_mosaic.version = 11 : i64} {
  func.func @_seghead_kernel(%arg0: i32, %arg1: memref<16x32xf32, #tpu.memory_space<vmem>>, %arg2: memref<32x128xf32, #tpu.memory_space<vmem>>, %arg3: memref<1x128xf32, #tpu.memory_space<vmem>>, %arg4: memref<16x128xf32, #tpu.memory_space<vmem>>) attributes {dimension_semantics = [#tpu.dimension_semantics<parallel>], iteration_bounds = array<i64: 1>, scalar_prefetch = 0 : i64, scratch_operands = 0 : i64, tpu.core_type = #tpu.core_type<tc>, window_params = [{transform_indices = @transform_0, window_bounds = array<i64: 16, 32>}, {pipeline_mode = #tpu.pipeline_mode<synchronous>, transform_indices = @transform_1, window_bounds = array<i64: 32, 128>}, {pipeline_mode = #tpu.pipeline_mode<synchronous>, transform_indices = @transform_2, window_bounds = array<i64: 1, 128>}, {transform_indices = @transform_3, window_bounds = array<i64: 16, 128>}]} {
    %c0 = arith.constant 0 : index
    %c0_0 = arith.constant 0 : index
    %0 = vector.load %arg1[%c0, %c0_0] : memref<16x32xf32, #tpu.memory_space<vmem>>, vector<16x32xf32>
    %c0_1 = arith.constant 0 : index
    %c0_2 = arith.constant 0 : index
    %1 = vector.load %arg2[%c0_1, %c0_2] : memref<32x128xf32, #tpu.memory_space<vmem>>, vector<32x128xf32>
    %cst = arith.constant dense<0.000000e+00> : vector<16x128xf32>
    %2 = tpu.matmul %0, %1, %cst {dimension_numbers = #tpu.dot_dimension_numbers<[1], [0], [0], [1], [0, 0, 1, 1], [], []>} : vector<16x32xf32>, vector<32x128xf32>, vector<16x128xf32> -> vector<16x128xf32>
    %c0_3 = arith.constant 0 : index
    %c0_4 = arith.constant 0 : index
    %3 = vector.load %arg3[%c0_3, %c0_4] : memref<1x128xf32, #tpu.memory_space<vmem>>, vector<1x128xf32>
    %4 = vector.broadcast %3 : vector<1x128xf32> to vector<16x128xf32>
    %5 = arith.addf %2, %4 : vector<16x128xf32>
    %c0_5 = arith.constant 0 : index
    %c0_6 = arith.constant 0 : index
    %6 = vector.load %arg4[%c0_5, %c0_6] : memref<16x128xf32, #tpu.memory_space<vmem>>, vector<16x128xf32>
    tpu.vector_store %arg4[%c0_5, %c0_6], %5 {strides = array<i32>} : memref<16x128xf32, #tpu.memory_space<vmem>>, vector<16x128xf32>,
    return
  }
  func.func @transform_0(%arg0: i32) -> (i32, i32) {
    %c0_i32 = arith.constant 0 : i32
    %c0_i32_0 = arith.constant 0 : i32
    return %arg0, %c0_i32 : i32, i32
  }
  func.func @transform_1(%arg0: i32) -> (i32, i32) {
    %c0_i32 = arith.constant 0 : i32
    %c0_i32_0 = arith.constant 0 : i32
    %c0_i32_1 = arith.constant 0 : i32
    return %c0_i32, %c0_i32_0 : i32, i32
  }
  func.func @transform_2(%arg0: i32) -> (i32, i32) {
    %c0_i32 = arith.constant 0 : i32
    %c0_i32_0 = arith.constant 0 : i32
    %c0_i32_1 = arith.constant 0 : i32
    return %c0_i32, %c0_i32_0 : i32, i32
  }
  func.func @transform_3(%arg0: i32) -> (i32, i32) {
    %c0_i32 = arith.constant 0 : i32
    %c0_i32_0 = arith.constant 0 : i32
    return %arg0, %c0_i32 : i32, i32
  }
}

</mosaic_0001>

<llo_original>
// kernel: segmentation_head_forward.1
$region0: #{segmentation_head_forward.1}
  #allocation0 [shape = 'u32[]', space=smem, size = 0x4, offset = 0x4, fixed_abs, tag = 'smem constant byte address 0x4 - core index']
  #allocation1 [shape = 'u32[72,128]{1,0:T(1,128)}', space=vmem, size = 0x9000, scoped, tag = 'internal scratch']
  %s0 = inlined_call_operand.vmem [shape: f32[16,32], index: 0, kind: input, shape index: {}]
  %s1 = inlined_call_operand.vmem [shape: f32[32,128], index: 1, kind: input, shape index: {}]
  %s2 = inlined_call_operand.vmem [shape: f32[1,128], index: 2, kind: input, shape index: {}]
  %s3 = inlined_call_operand.vmem [shape: f32[16,128], index: 3, kind: output, shape index: {}]
  %s4 = sld [smem:[#allocation0]]
  $region22: #{segmentation_head_forward.1} parent=0
    _
  %s6 = ssub.s32 1, %s4
  %s7 = scalar_select 0, %s6, %s4
  // Predicated region
  $region2: #{segmentation_head_forward.1} parent=0 // pred_check
    _
  $region3: #{segmentation_head_forward.1} parent=0 // pred_check_branch
    %9 = sbr.rel (0) target = $region5
  $region4: #{segmentation_head_forward.1} parent=0 // pred_region
    _
  $region5: #{segmentation_head_forward.1} parent=0 // pred_fallthru
    _
  // Predicated region
  $region6: #{segmentation_head_forward.1} parent=0 // pred_check
    _
  $region7: #{segmentation_head_forward.1} parent=0 // pred_check_branch
    %11 = sbr.rel (0) target = $region9
  $region8: #{segmentation_head_forward.1} parent=0 // pred_region
    _
  $region9: #{segmentation_head_forward.1} parent=0 // pred_fallthru
    _
  // Predicated region
  $region10: #{segmentation_head_forward.1} parent=0 // pred_check
    _
  $region11: #{segmentation_head_forward.1} parent=0 // pred_check_branch
    %13 = sbr.rel (0) target = $region13
  $region12: #{segmentation_head_forward.1} parent=0 // pred_region
    _
  $region13: #{segmentation_head_forward.1} parent=0 // pred_fallthru
    _
  %v14 = vld [vmem:[%s0] sm:$0xff]
  %v15 = vld [vmem:[%s0 + $0x8] sm:$0xff]
  %v16 = vld [vmem:[%s1] sm:$0xff]
  %v17 = vld [vmem:[%s1 + $0x8] sm:$0xff]
  %v18 = vld [vmem:[%s1 + $0x10] sm:$0xff]
  %v19 = vld [vmem:[%s1 + $0x18] sm:$0xff]
  %v20 = vld [vmem:[%s2] sm:$0x1]
  %v22 = vperm.slane %v20, 0
  %vm24 = vcmask 261120
  %v26 = vsel %vm24, %v14, 0
  %v29 = vsel %vm24, %v15, 0
  %31 = vmatpush.msra.mxu0 0.0
  %32 = vmatpush.msra.mxu0 0.0
  %33 = vmatpush.msra.mxu0 0.0
  %34 = vmatpush.msra.mxu0 0.0
  %35 = vmatpush.msra.mxu0 0.0
  %36 = vmatpush.msra.mxu0 0.0
  %37 = vmatpush.msra.mxu0 0.0
  %38 = vmatpush.msra.mxu0 0.0
  %39 = vmatpush.msra.mxu0 0.0
  %40 = vmatpush.msra.mxu0 0.0
  %41 = vmatpush.msra.mxu0 0.0
  %42 = vmatpush.msra.mxu0 0.0
  %43 = vmatpush.msra.mxu0 %v19
  %44 = vmatpush.msra.mxu0 %v18
  %45 = vmatpush.msra.mxu0 %v17
  %46 = vmatpush.msra.mxu0 %v16
  %47 = vmatmul.f32.gmra.mxu0 %v26
  %v48 = vpop.f32.mrf.mxu0
  %v49 = vadd.f32 %v22, %v48
  %50 = vmatmul.f32.gmra.mxu0 %v29
  %v51 = vpop.f32.mrf.mxu0
  %v52 = vadd.f32 %v22, %v51
  %53 = vdwg.mxu0
  %54 = vst [vmem:[%s3] sm:$0xff] %v49
  %55 = vst [vmem:[%s3 + $0x8] sm:$0xff] %v52
  // Predicated region
  $region14: #{segmentation_head_forward.1} parent=0 // pred_check
    _
  $region15: #{segmentation_head_forward.1} parent=0 // pred_check_branch
    %57 = sbr.rel (0) target = $region17
  $region16: #{segmentation_head_forward.1} parent=0 // pred_region
    _
  $region17: #{segmentation_head_forward.1} parent=0 // pred_fallthru
    _
  // Predicated region
  $region18: #{segmentation_head_forward.1} parent=0 // pred_check
    _
  $region19: #{segmentation_head_forward.1} parent=0 // pred_check_branch
    %59 = sbr.rel (0) target = $region21
  $region20: #{segmentation_head_forward.1} parent=0 // pred_region
    _
  $region21: #{segmentation_head_forward.1} parent=0 // pred_fallthru
    _

</llo_original>
